<compile_context>
chip_gen: v6e
topology: v6e:2x2x1
jax: 0.10.0
libtpu: 0.0.40
codegen_flags: <defaults>
</compile_context>

<pallas_src>
import functools

import jax
import jax.numpy as jnp
from jax.experimental import pallas as pl
from jax.experimental.pallas import tpu as pltpu


def _pick_tile_b(B, C, itemsize):
    """Footprint-aware batch tile size + small-VMEM (v7x) flag."""
    try:
        vmem_bytes = pltpu.get_tpu_info().vmem_capacity_bytes
    except Exception:
        vmem_bytes = 128 * 1024 * 1024
    small_vmem = vmem_bytes <= 64 * 1024 * 1024          # v7x: 64 MiB physical / 32 MiB scoped

    # Per batch row: 2x double-buffered input rows + ~3 live f32 (C,) rows of
    # in-kernel intermediates (shifted logits, wmask, product).
    bytes_per_row = 2 * C * itemsize + 3 * C * 4
    budget = (12 if small_vmem else 48) * 1024 * 1024
    tb = budget // max(1, bytes_per_row)
    tb = min(512 if small_vmem else 1024, tb)

    # Round to sublane packing (16 rows for bf16 when the batch is big enough).
    rnd = 16 if (itemsize == 2 and B >= 16) else 8
    tb = max(rnd, (tb // rnd) * rnd)
    if B >= rnd:
        tb = min(tb, (B // rnd) * rnd)                   # keep block <= batch (ragged tail masked)
    return tb, small_vmem


def _ricap_ce_kernel(logits_ref, side_ref, partial_ref, *, batch, tile_b, ragged):
    # One batch tile: logits (TB, C); side (TB, 8) = [4 patch labels | 4 weights].
    x0 = logits_ref[...].astype(jnp.float32)             # single cast, (TB, C)
    tb, c = x0.shape

    side = side_ref[...].astype(jnp.float32)             # (TB, 8)
    cls = side[:, 0:4].astype(jnp.int32)                 # (TB, 4) patch labels
    w = side[:, 4:8]                                      # (TB, 4) patch weights

    if ragged:
        # Ragged last tile: rows >= batch hold unspecified data. Zero both the
        # logits (keeps lse finite, no 0*inf NaNs) and the weights.
        row = pl.program_id(0) * tile_b + jax.lax.broadcasted_iota(jnp.int32, (tb, 1), 0)
        valid = row < batch
        x0 = jnp.where(valid, x0, 0.0)
        w = jnp.where(valid, w, 0.0)

    # Numerically-stable shifted logits, reused by exp() and the masked gather.
    m = jnp.max(x0, axis=-1, keepdims=True)               # (TB, 1)
    x = x0 - m                                             # (TB, C); x0 dies here
    log_sumexp = jnp.log(jnp.sum(jnp.exp(x), axis=-1, keepdims=True))   # (TB, 1) == lse - m

    # Fused weighted one-hot mask: wmask[b, j] = sum_k w[b, k] * (j == cls[b, k]).
    col = jax.lax.broadcasted_iota(jnp.int32, (1, c), 1)   # (1, C), broadcast in compare
    wmask = jnp.where(col == cls[:, 0:1], w[:, 0:1], 0.0)
    for k in range(1, 4):                                  # static unroll, 4 ricap patches
        wmask = wmask + jnp.where(col == cls[:, k:k + 1], w[:, k:k + 1], 0.0)

    w_sum = jnp.sum(w, axis=-1, keepdims=True)             # (TB, 1)
    # sum_{b,k} w[b,k] * (lse[b] - logits[b, cls[b,k]])
    #   = sum_b w_sum[b]*(lse[b]-m[b]) - sum_{b,j} (logits[b,j]-m[b]) * wmask[b,j]
    partial_ref[0, 0] = jnp.sum(log_sumexp * w_sum) - jnp.sum(x * wmask)


def ricap_loss(output, target, reduction='mean'):
    """Pallas equivalent of RicapLoss(CrossEntropyLoss()).forward(output, target)."""
    B, C = output.shape
    ricap = (target.ndim == 2)

    if ricap:
        # (B, 8): 4 patch labels | 4 patch weights (tiny copy; logits untouched).
        side = target[:, 1:9].astype(jnp.float32)
    else:
        # Plain-CE branch: replicate the label into 4 columns with unit weights;
        # the tile partial then equals 4x the per-sample CE sum.
        lbl = target.astype(jnp.float32)[:, None]
        side = jnp.concatenate([jnp.tile(lbl, (1, 4)), jnp.ones((B, 4), jnp.float32)], axis=1)

    itemsize = jnp.dtype(output.dtype).itemsize
    tb, small_vmem = _pick_tile_b(B, C, itemsize)
    num_tiles = pl.cdiv(B, tb)
    ragged = (B % tb) != 0

    cost = pl.CostEstimate(
        flops=int(14 * B * C),
        transcendentals=int(B * C),
        bytes_accessed=int(B * C * itemsize + B * 8 * 4 + num_tiles * 4),
    )

    partials = pl.pallas_call(
        functools.partial(_ricap_ce_kernel, batch=B, tile_b=tb, ragged=ragged),
        out_shape=jax.ShapeDtypeStruct((num_tiles, 1), jnp.float32),
        grid=(num_tiles,),
        in_specs=[
            pl.BlockSpec((tb, C), lambda i: (i, 0)),   # logits tile, native dtype in HBM
            pl.BlockSpec((tb, 8), lambda i: (i, 0)),   # labels+weights tile (one small DMA)
        ],
        out_specs=pl.BlockSpec((1, 1), lambda i: (i, 0),
                               memory_space=pltpu.MemorySpace.SMEM),
        compiler_params=pltpu.CompilerParams(
            dimension_semantics=("parallel",),          # megacore sharding on v7x
            vmem_limit_bytes=(32 if small_vmem else 64) * 1024 * 1024,
        ),
        cost_estimate=cost,
    )(output, side)

    total = jnp.sum(partials)

    if ricap:
        # torch.mean(torch.stack(loss)) is already a scalar, so the module's
        # trailing .mean()/.sum() are identities.
        return total / jnp.float32(4 * B)

    if reduction == 'mean':
        return total / jnp.float32(4 * B)
    if reduction == 'sum':
        return total / jnp.float32(4)
    # TODO(synk): reduction='none' on the non-ricap branch returns a per-sample
    # vector in PyTorch; this scalar-accumulating kernel does not produce it.
    raise NotImplementedError("reduction='none' on the non-ricap branch is not supported")


def _ref_ricap_loss(output, target):
    """Pure-JAX reference for correctness checking."""
    logp = jax.nn.log_softmax(output.astype(jnp.float32), axis=-1)
    c = target[:, 1:5].astype(jnp.int32)
    w = target[:, 5:9].astype(jnp.float32)
    losses = [
        w[:, k] * (-jnp.take_along_axis(logp, c[:, k:k + 1], axis=1)[:, 0])
        for k in range(4)
    ]
    return jnp.mean(jnp.stack(losses))


def _make_inputs(key, B, C, dtype):
    k_logit, k_lbl, k_w = jax.random.split(key, 3)
    logits = jax.random.normal(k_logit, (B, C), dtype=jnp.float32).astype(dtype)
    labels = jax.random.randint(k_lbl, (B, 5), 0, C).astype(jnp.float32)
    raw_w = jax.random.uniform(k_w, (B, 4), dtype=jnp.float32) + 1e-3
    weights = raw_w / jnp.sum(raw_w, axis=1, keepdims=True)
    target = jnp.concatenate([labels, weights], axis=1)   # (B, 9)
    return logits, target


if __name__ == "__main__":
    key = jax.random.PRNGKey(0)
    k1, k2 = jax.random.split(key)

    # Case 1: f32 logits, tile-aligned batch (single full tile, no masking path).
    logits, target = _make_inputs(k1, B=8, C=32, dtype=jnp.float32)
    out = jax.block_until_ready(ricap_loss(logits, target))
    ref = _ref_ricap_loss(logits, target)
    assert jnp.allclose(out, ref, rtol=1e-5, atol=1e-5), (out, ref)

    # Case 2: bf16 logits fed straight to the kernel, batch NOT a multiple of the
    # tile -> exercises the ragged last tile with in-kernel row masking (no pad
    # copy of the logits in HBM).
    logits_bf, target_bf = _make_inputs(k2, B=12, C=40, dtype=jnp.bfloat16)
    out_bf = jax.block_until_ready(ricap_loss(logits_bf, target_bf))
    ref_bf = _ref_ricap_loss(logits_bf, target_bf)
    assert jnp.allclose(out_bf, ref_bf, rtol=1e-4, atol=1e-4), (out_bf, ref_bf)

    print("KERNEL_OK")
</pallas_src>

<mosaic_0001>
module attributes {stable_mosaic.version = 11 : i64} {
  func.func @_ricap_ce_kernel(%arg0: i32, %arg1: memref<8x32xf32, #tpu.memory_space<vmem>>, %arg2: memref<8x8xf32, #tpu.memory_space<vmem>>, %arg3: memref<1x1xf32, #tpu.memory_space<smem>>) attributes {dimension_semantics = [#tpu.dimension_semantics<parallel>], iteration_bounds = array<i64: 1>, scalar_prefetch = 0 : i64, scratch_operands = 0 : i64, tpu.core_type = #tpu.core_type<tc>, window_params = [{transform_indices = @transform_0, window_bounds = array<i64: 8, 32>}, {transform_indices = @transform_1, window_bounds = array<i64: 8, 8>}, {transform_indices = @transform_2, window_bounds = array<i64: 1, 1>}]} {
    %c0 = arith.constant 0 : index
    %c0_0 = arith.constant 0 : index
    %0 = vector.load %arg1[%c0, %c0_0] : memref<8x32xf32, #tpu.memory_space<vmem>>, vector<8x32xf32>
    %c0_1 = arith.constant 0 : index
    %c0_2 = arith.constant 0 : index
    %1 = vector.load %arg2[%c0_1, %c0_2] : memref<8x8xf32, #tpu.memory_space<vmem>>, vector<8x8xf32>
    %2 = vector.extract_strided_slice %1 {offsets = [0, 0], sizes = [8, 4], strides = [1, 1]} : vector<8x8xf32> to vector<8x4xf32>
    %3 = arith.fptosi %2 : vector<8x4xf32> to vector<8x4xi32>
    %4 = vector.extract_strided_slice %1 {offsets = [0, 4], sizes = [8, 4], strides = [1, 1]} : vector<8x8xf32> to vector<8x4xf32>
    %cst = arith.constant dense<0xFF800000> : vector<8xf32>
    %5 = vector.multi_reduction <maximumf>, %0, %cst [1] : vector<8x32xf32> to vector<8xf32>
    %6 = vector.shape_cast %5 : vector<8xf32> to vector<8x1xf32>
    %7 = vector.broadcast %6 : vector<8x1xf32> to vector<8x32xf32>
    %8 = arith.subf %0, %7 : vector<8x32xf32>
    %9 = math.exp %8 : vector<8x32xf32>
    %cst_3 = arith.constant dense<0.000000e+00> : vector<8xf32>
    %10 = vector.multi_reduction <add>, %9, %cst_3 [1] : vector<8x32xf32> to vector<8xf32>
    %11 = vector.shape_cast %10 : vector<8xf32> to vector<8x1xf32>
    %12 = math.log %11 : vector<8x1xf32>
    %13 = tpu.iota {dimensions = array<i32: 1>} : vector<1x32xi32>
    %14 = vector.extract_strided_slice %3 {offsets = [0, 0], sizes = [8, 1], strides = [1, 1]} : vector<8x4xi32> to vector<8x1xi32>
    %15 = vector.broadcast %13 : vector<1x32xi32> to vector<8x32xi32>
    %16 = vector.broadcast %14 : vector<8x1xi32> to vector<8x32xi32>
    %17 = arith.cmpi eq, %15, %16 : vector<8x32xi32>
    %18 = vector.extract_strided_slice %4 {offsets = [0, 0], sizes = [8, 1], strides = [1, 1]} : vector<8x4xf32> to vector<8x1xf32>
    %cst_4 = arith.constant 0.000000e+00 : f32
    %19 = vector.shape_cast %18 : vector<8x1xf32> to vector<8x1xf32>
    %20 = vector.broadcast %19 : vector<8x1xf32> to vector<8x32xf32>
    %21 = vector.broadcast %cst_4 : f32 to vector<8x32xf32>
    %22 = arith.select %17, %20, %21 : vector<8x32xi1>, vector<8x32xf32>
    %23 = vector.extract_strided_slice %3 {offsets = [0, 1], sizes = [8, 1], strides = [1, 1]} : vector<8x4xi32> to vector<8x1xi32>
    %24 = vector.broadcast %13 : vector<1x32xi32> to vector<8x32xi32>
    %25 = vector.broadcast %23 : vector<8x1xi32> to vector<8x32xi32>
    %26 = arith.cmpi eq, %24, %25 : vector<8x32xi32>
    %27 = vector.extract_strided_slice %4 {offsets = [0, 1], sizes = [8, 1], strides = [1, 1]} : vector<8x4xf32> to vector<8x1xf32>
    %cst_5 = arith.constant 0.000000e+00 : f32
    %28 = vector.shape_cast %27 : vector<8x1xf32> to vector<8x1xf32>
    %29 = vector.broadcast %28 : vector<8x1xf32> to vector<8x32xf32>
    %30 = vector.broadcast %cst_5 : f32 to vector<8x32xf32>
    %31 = arith.select %26, %29, %30 : vector<8x32xi1>, vector<8x32xf32>
    %32 = arith.addf %22, %31 : vector<8x32xf32>
    %33 = vector.extract_strided_slice %3 {offsets = [0, 2], sizes = [8, 1], strides = [1, 1]} : vector<8x4xi32> to vector<8x1xi32>
    %34 = vector.broadcast %13 : vector<1x32xi32> to vector<8x32xi32>
    %35 = vector.broadcast %33 : vector<8x1xi32> to vector<8x32xi32>
    %36 = arith.cmpi eq, %34, %35 : vector<8x32xi32>
    %37 = vector.extract_strided_slice %4 {offsets = [0, 2], sizes = [8, 1], strides = [1, 1]} : vector<8x4xf32> to vector<8x1xf32>
    %cst_6 = arith.constant 0.000000e+00 : f32
    %38 = vector.shape_cast %37 : vector<8x1xf32> to vector<8x1xf32>
    %39 = vector.broadcast %38 : vector<8x1xf32> to vector<8x32xf32>
    %40 = vector.broadcast %cst_6 : f32 to vector<8x32xf32>
    %41 = arith.select %36, %39, %40 : vector<8x32xi1>, vector<8x32xf32>
    %42 = arith.addf %32, %41 : vector<8x32xf32>
    %43 = vector.extract_strided_slice %3 {offsets = [0, 3], sizes = [8, 1], strides = [1, 1]} : vector<8x4xi32> to vector<8x1xi32>
    %44 = vector.broadcast %13 : vector<1x32xi32> to vector<8x32xi32>
    %45 = vector.broadcast %43 : vector<8x1xi32> to vector<8x32xi32>
    %46 = arith.cmpi eq, %44, %45 : vector<8x32xi32>
    %47 = vector.extract_strided_slice %4 {offsets = [0, 3], sizes = [8, 1], strides = [1, 1]} : vector<8x4xf32> to vector<8x1xf32>
    %cst_7 = arith.constant 0.000000e+00 : f32
    %48 = vector.shape_cast %47 : vector<8x1xf32> to vector<8x1xf32>
    %49 = vector.broadcast %48 : vector<8x1xf32> to vector<8x32xf32>
    %50 = vector.broadcast %cst_7 : f32 to vector<8x32xf32>
    %51 = arith.select %46, %49, %50 : vector<8x32xi1>, vector<8x32xf32>
    %52 = arith.addf %42, %51 : vector<8x32xf32>
    %cst_8 = arith.constant dense<0.000000e+00> : vector<8xf32>
    %53 = vector.multi_reduction <add>, %4, %cst_8 [1] : vector<8x4xf32> to vector<8xf32>
    %54 = vector.shape_cast %53 : vector<8xf32> to vector<8x1xf32>
    %55 = arith.mulf %12, %54 : vector<8x1xf32>
    %56 = vector.shape_cast %55 : vector<8x1xf32> to vector<1x8x1xf32>
    %cst_9 = arith.constant dense<0.000000e+00> : vector<1xf32>
    %57 = vector.multi_reduction <add>, %56, %cst_9 [1, 2] : vector<1x8x1xf32> to vector<1xf32>
    %58 = vector.shape_cast %57 : vector<1xf32> to vector<1x1x1xf32>
    %59 = vector.extract %58[0, 0, 0] : f32 from vector<1x1x1xf32>
    %60 = arith.mulf %8, %52 : vector<8x32xf32>
    %61 = vector.shape_cast %60 : vector<8x32xf32> to vector<1x8x32xf32>
    %cst_10 = arith.constant dense<0.000000e+00> : vector<1xf32>
    %62 = vector.multi_reduction <add>, %61, %cst_10 [1, 2] : vector<1x8x32xf32> to vector<1xf32>
    %63 = vector.shape_cast %62 : vector<1xf32> to vector<1x1x1xf32>
    %64 = vector.extract %63[0, 0, 0] : f32 from vector<1x1x1xf32>
    %65 = arith.subf %59, %64 : f32
    %c0_11 = arith.constant 0 : index
    %c0_12 = arith.constant 0 : index
    %66 = memref.load %arg3[%c0_11, %c0_12] : memref<1x1xf32, #tpu.memory_space<smem>>
    memref.store %65, %arg3[%c0_11, %c0_12] : memref<1x1xf32, #tpu.memory_space<smem>>
    return
  }
  func.func @transform_0(%arg0: i32) -> (i32, i32) {
    %c0_i32 = arith.constant 0 : i32
    %c0_i32_0 = arith.constant 0 : i32
    return %arg0, %c0_i32 : i32, i32
  }
  func.func @transform_1(%arg0: i32) -> (i32, i32) {
    %c0_i32 = arith.constant 0 : i32
    %c0_i32_0 = arith.constant 0 : i32
    return %arg0, %c0_i32 : i32, i32
  }
  func.func @transform_2(%arg0: i32) -> (i32, i32) {
    %c0_i32 = arith.constant 0 : i32
    %c0_i32_0 = arith.constant 0 : i32
    return %arg0, %c0_i32 : i32, i32
  }
}

</mosaic_0001>

<llo_original>
// kernel: tpu_custom_call.1
$region0: #{tpu_custom_call.1}
  #allocation0 [shape = 'u32[]', space=smem, size = 0x4, offset = 0x4, fixed_abs, tag = 'smem constant byte address 0x4 - core index']
  #allocation1 [shape = 'u32[144,128]{1,0:T(1,128)}', space=vmem, size = 0x12000, scoped, tag = 'internal scratch']
  %s0 = inlined_call_operand.hbm [shape: f32[8,32], index: 0, kind: input, shape index: {}]
  %s1 = inlined_call_operand.hbm [shape: f32[8,8], index: 1, kind: input, shape index: {}]
  %s2 = inlined_call_operand.hbm [shape: f32[1,1], index: 2, kind: output, shape index: {}]
  %s3 = sld [smem:[#allocation0]]
  $region26: #{tpu_custom_call.1} parent=0
    _
  %s5 = ssub.s32 1, %s3
  %s6 = scalar_select 0, %s5, %s3
  $region1: #{tpu_custom_call.1} parent=0
    #allocation2 [shape = 'u8[4096]{0}', space=vmem, size = 0x1000, scoped, tag = 'input window, operand 0, single buffered']
    #allocation3 [shape = 's32[1]{0}', space=sflag, size = 0x4, scoped, tag = 'scoped memory for tpu_custom_call.1']
    #allocation4 [shape = 's32[1]{0}', space=sflag, size = 0x4, scoped, tag = 'scoped memory for tpu_custom_call.1']
    #allocation5 [shape = 'u8[4096]{0}', space=vmem, size = 0x1000, scoped, tag = 'input window, operand 1, single buffered']
    #allocation6 [shape = 's32[1]{0}', space=sflag, size = 0x4, scoped, tag = 'scoped memory for tpu_custom_call.1']
    #allocation7 [shape = 'u8[512]{0}', space=smem, size = 0x200, scoped, tag = 'output window, operand 0, single buffered']
    %7 = vsyncpa [#allocation3], 0
    %8 = vsyncpa [#allocation6], 0
    %9 = vsyncpa [#allocation4], 0
    // Predicated region
    $region2: #{tpu_custom_call.1} parent=1 // pred_check
      _
    $region3: #{tpu_custom_call.1} parent=1 // pred_check_branch
      %11 = sbr.rel (0) target = $region5
    $region4: #{tpu_custom_call.1} parent=1 // pred_region
      %s13 = ssub.s32 128, 128
      %14 = vsyncadd [#allocation3], %s13
      %s16 = sshll.u32 [#allocation2], 4
      %s17 = int_to_ptr.vmem [resolvable:$true] %s16
      %19 = dma.hbm_to_vmem [thread:$0]  %s0, 128, %s17, [#allocation3]
    $region5: #{tpu_custom_call.1} parent=1 // pred_fallthru
      _
    // Predicated region
    $region6: #{tpu_custom_call.1} parent=1 // pred_check
      _
    $region7: #{tpu_custom_call.1} parent=1 // pred_check_branch
      %21 = sbr.rel (0) target = $region9
    $region8: #{tpu_custom_call.1} parent=1 // pred_region
      %s23 = ssub.s32 128, 128
      %24 = vsyncadd [#allocation6], %s23
      %s26 = sshll.u32 [#allocation5], 4
      %s27 = int_to_ptr.vmem [resolvable:$true] %s26
      %29 = dma.hbm_to_vmem [thread:$0]  %s1, 128, %s27, [#allocation6]
    $region9: #{tpu_custom_call.1} parent=1 // pred_fallthru
      _
    // Predicated region
    $region10: #{tpu_custom_call.1} parent=1 // pred_check
      _
    $region11: #{tpu_custom_call.1} parent=1 // pred_check_branch
      %31 = sbr.rel (0) target = $region13
    $region12: #{tpu_custom_call.1} parent=1 // pred_region
      %32 = dma.done [#allocation3], 128
    $region13: #{tpu_custom_call.1} parent=1 // pred_fallthru
      _
    // Predicated region
    $region14: #{tpu_custom_call.1} parent=1 // pred_check
      _
    $region15: #{tpu_custom_call.1} parent=1 // pred_check_branch
      %34 = sbr.rel (0) target = $region17
    $region16: #{tpu_custom_call.1} parent=1 // pred_region
      %35 = dma.done [#allocation6], 128
    $region17: #{tpu_custom_call.1} parent=1 // pred_fallthru
      _
    %v36 = vld [vmem:[#allocation2] sm:$0xff]
    %v37 = vld [vmem:[#allocation5] sm:$0xff]
    %v38 = vcvt.f32.s32.to.zero.pseudo %v37
    %vm39 = vcmask 261120
    %v40 = vsel %vm39, %v36, -inf
    %41 = vmax.xlane.f32.xlu0 %v40
    %v42 = vpop.xlane.xlu0 %41
    %v43 = vsub.f32 %v36, %v42
    %v44 = vmul.f32 %v43, 1.442695
    %v45 = vpow.pop %v44
    %v46 = vsel %vm39, %v45, 0.0
    %47 = vadd.xlane.f32.xlu0 %v46
    %v48 = vpop.xlane.xlu0 %47
    %v49 = vlog2.pop %v48
    %v50 = vmul.f32 %v49, 0.6931472
    %v51 = vlaneseq
    %v52 = vand.u32 %v51, 127
    %53 = vset.pattern.permute.xlu0 0
    %54 = vperm.xlu0 %53, %v38
    %v55 = vpop.permute.xlu0 %54
    %vm56 = vcmp.eq.s32.totalorder %v52, %v55
    %58 = vset.pattern.permute.xlu0 4
    %59 = vperm.xlu0 %58, %v37
    %v60 = vpop.permute.xlu0 %59
    %v62 = vsel %vm56, %v60, 0.0
    %63 = vset.pattern.permute.xlu0 1
    %64 = vperm.xlu0 %63, %v38
    %v65 = vpop.permute.xlu0 %64
    %vm66 = vcmp.eq.s32.totalorder %v52, %v65
    %67 = vset.pattern.permute.xlu0 5
    %68 = vperm.xlu0 %67, %v37
    %v69 = vpop.permute.xlu0 %68
    %v71 = vsel %vm66, %v69, 0.0
    %v72 = vadd.f32 %v62, %v71
    %73 = vset.pattern.permute.xlu0 2
    %74 = vperm.xlu0 %73, %v38
    %v75 = vpop.permute.xlu0 %74
    %vm76 = vcmp.eq.s32.totalorder %v52, %v75
    %77 = vset.pattern.permute.xlu0 6
    %78 = vperm.xlu0 %77, %v37
    %v79 = vpop.permute.xlu0 %78
    %v81 = vsel %vm76, %v79, 0.0
    %v82 = vadd.f32 %v72, %v81
    %83 = vset.pattern.permute.xlu0 3
    %84 = vperm.xlu0 %83, %v38
    %v85 = vpop.permute.xlu0 %84
    %vm86 = vcmp.eq.s32.totalorder %v52, %v85
    %87 = vset.pattern.permute.xlu0 7
    %88 = vperm.xlu0 %87, %v37
    %v89 = vpop.permute.xlu0 %88
    %v91 = vsel %vm86, %v89, 0.0
    %v92 = vadd.f32 %v82, %v91
    %93 = vrot.lane.b32.xlu0 %v37, 124
    %v94 = vpop.permute.xlu0 %93
    %vm96 = vcmask 31744
    %v97 = vsel %vm96, %v94, 0.0
    %98 = vadd.xlane.f32.xlu0 %v97
    %v99 = vpop.xlane.xlu0 %98
    %v100 = vmul.f32 %v50, %v99
    %vm101 = vcmask 7168
    %v102 = vsel %vm101, %v100, 0.0
    %103 = vadd.xlane.f32.xlu0 %v102
    %v104 = vpop.xlane.xlu0 %103
    %v105 = vrot.slane %v104, 4
    %v106 = vadd.f32 %v104, %v105
    %v107 = vrot.slane %v106, 2
    %v108 = vadd.f32 %v106, %v107
    %v109 = vrot.slane %v108, 1
    %v110 = vadd.f32 %v108, %v109
    %s111 = vtos %v110
    %v112 = vmul.f32 %v43, %v92
    %v113 = vsel %vm39, %v112, 0.0
    %114 = vadd.xlane.f32.xlu0 %v113
    %v115 = vpop.xlane.xlu0 %114
    %v116 = vrot.slane %v115, 4
    %v117 = vadd.f32 %v115, %v116
    %v118 = vrot.slane %v117, 2
    %v119 = vadd.f32 %v117, %v118
    %v120 = vrot.slane %v119, 1
    %v121 = vadd.f32 %v119, %v120
    %s122 = vtos %v121
    %s123 = ssub.f32 %s111, %s122
    %s124 = scalar_lea.smem [#allocation7], 0
    %125 = sst [smem:[%s124]] %s123
    // Predicated region
    $region18: #{tpu_custom_call.1} parent=1 // pred_check
      _
    $region19: #{tpu_custom_call.1} parent=1 // pred_check_branch
      %127 = sbr.rel (0) target = $region21
    $region20: #{tpu_custom_call.1} parent=1 // pred_region
      %s129 = ssub.s32 16, 16
      %130 = vsyncadd [#allocation4], %s129
      %133 = dma.smem_to_hbm [#allocation7], 16, %s2, [#allocation4]
    $region21: #{tpu_custom_call.1} parent=1 // pred_fallthru
      _
    // Predicated region
    $region22: #{tpu_custom_call.1} parent=1 // pred_check
      _
    $region23: #{tpu_custom_call.1} parent=1 // pred_check_branch
      %135 = sbr.rel (0) target = $region25
    $region24: #{tpu_custom_call.1} parent=1 // pred_region
      %136 = dma.done [#allocation4], 16
    $region25: #{tpu_custom_call.1} parent=1 // pred_fallthru
      _
    %137 = sfence
    %138 = vsyncpa [#allocation3], 1
    %139 = vsyncpa [#allocation6], 1
    %140 = vsyncpa [#allocation4], 1

</llo_original>
